<compile_context>
chip_gen: v7x
topology: tpu7x:2x2x1
jax: 0.10.0
libtpu: 0.0.40
codegen_flags: <defaults>
</compile_context>

<pallas_src>
import functools

import jax
import jax.numpy as jnp
from jax.experimental import pallas as pl
from jax.experimental.pallas import tpu as pltpu


# -----------------------------------------------------------------------------
# Kernels
# -----------------------------------------------------------------------------
def _mlp_kernel_feats(x_ref, w1_ref, b1_ref, w2_ref, b2_ref, w3_ref, b3_ref,
                      feats_ref, logits_ref):
    cdt = w1_ref.dtype  # compute dtype fed to the MXU (f32 or bf16)

    # x = vector_data.float()  (cast to compute dtype for the dot)
    x = x_ref[...].astype(cdt)

    # h1 = relu(vec_emb_proj(x))
    h1 = jnp.dot(x, w1_ref[...], preferred_element_type=jnp.float32) + b1_ref[...]
    h1 = jnp.maximum(h1, 0.0)

    # feats = fc1(h1)
    feats = (jnp.dot(h1.astype(cdt), w2_ref[...],
                     preferred_element_type=jnp.float32) + b2_ref[...])
    feats_ref[...] = feats

    # h2 = dropout(relu(feats))  (dropout = identity at inference)
    h2 = jnp.maximum(feats, 0.0)

    # logits = fc2(h2)
    logits_ref[...] = (jnp.dot(h2.astype(cdt), w3_ref[...],
                               preferred_element_type=jnp.float32) + b3_ref[...])


def _mlp_kernel_logits_only(x_ref, w1_ref, b1_ref, w2_ref, b2_ref, w3_ref, b3_ref,
                            logits_ref):
    cdt = w1_ref.dtype

    x = x_ref[...].astype(cdt)

    h1 = jnp.dot(x, w1_ref[...], preferred_element_type=jnp.float32) + b1_ref[...]
    h1 = jnp.maximum(h1, 0.0)

    feats = (jnp.dot(h1.astype(cdt), w2_ref[...],
                     preferred_element_type=jnp.float32) + b2_ref[...])
    h2 = jnp.maximum(feats, 0.0)

    logits_ref[...] = (jnp.dot(h2.astype(cdt), w3_ref[...],
                               preferred_element_type=jnp.float32) + b3_ref[...])


# -----------------------------------------------------------------------------
# Wrapper
# -----------------------------------------------------------------------------
def _round_up(x, m):
    return ((x + m - 1) // m) * m


def _pad_params(params, hidden_pad, cls_pad, compute_dtype):
    """Zero-pad hidden (100 -> 128) and class dims (C -> 128k); cast weights."""
    D, H = params["w1"].shape
    C = params["w3"].shape[1]

    w1 = jnp.pad(params["w1"], ((0, 0), (0, hidden_pad - H)))
    b1 = jnp.pad(params["b1"], ((0, 0), (0, hidden_pad - H)))
    w2 = jnp.pad(params["w2"], ((0, hidden_pad - H), (0, hidden_pad - H)))
    b2 = jnp.pad(params["b2"], ((0, 0), (0, hidden_pad - H)))
    w3 = jnp.pad(params["w3"], ((0, hidden_pad - H), (0, cls_pad - C)))
    b3 = jnp.pad(params["b3"], ((0, 0), (0, cls_pad - C)))

    # Weights feed the MXU in compute_dtype; biases stay f32 (f32 accumulate + add).
    w1 = w1.astype(compute_dtype)
    w2 = w2.astype(compute_dtype)
    w3 = w3.astype(compute_dtype)
    b1 = b1.astype(jnp.float32)
    b2 = b2.astype(jnp.float32)
    b3 = b3.astype(jnp.float32)
    return w1, b1, w2, b2, w3, b3


def clinical_model_forward(vector_data, params, get_feats=False,
                           tm_max=512, compute_dtype=jnp.float32):
    """Fused forward pass of Clinical_Model on TPU via Pallas.

    vector_data: (B, input_vector_dim) array (any float/int dtype; cast to f32/bf16).
    params: dict with w1 (D,100), b1 (1,100), w2 (100,100), b2 (1,100),
            w3 (100,C), b3 (1,C)   [weights stored (in, out), i.e. PyTorch W^T].
    compute_dtype: jnp.float32 (exact) or jnp.bfloat16 (faster on v6e/v7x;
                   f32 accumulation + f32 elementwise are kept either way).
    """
    B, D = vector_data.shape
    H = params["w1"].shape[1]            # logical hidden = 100
    C = params["w3"].shape[1]            # logical num_classes

    # Lane-dense padded dims (multiples of 128).
    H_pad = _round_up(H, 128)
    C_pad = _round_up(C, 128)

    # Batch tile: multiple of 8, as large as useful, capped for VMEM headroom.
    TM = min(tm_max, _round_up(B, 8))
    B_pad = _round_up(B, TM)
    grid = (pl.cdiv(B_pad, TM),)

    x = vector_data
    if B_pad != B:
        x = jnp.pad(x, ((0, B_pad - B), (0, 0)))

    w1, b1, w2, b2, w3, b3 = _pad_params(params, H_pad, C_pad, compute_dtype)

    # Batch-tiled input/output; weights/biases resident at block (0, 0).
    x_spec = pl.BlockSpec((TM, D), lambda i: (i, 0))
    weight_specs = [
        pl.BlockSpec((D, H_pad), lambda i: (0, 0)),      # w1
        pl.BlockSpec((1, H_pad), lambda i: (0, 0)),      # b1
        pl.BlockSpec((H_pad, H_pad), lambda i: (0, 0)),  # w2
        pl.BlockSpec((1, H_pad), lambda i: (0, 0)),      # b2
        pl.BlockSpec((H_pad, C_pad), lambda i: (0, 0)),  # w3
        pl.BlockSpec((1, C_pad), lambda i: (0, 0)),      # b3
    ]
    feats_spec = pl.BlockSpec((TM, H_pad), lambda i: (i, 0))
    logits_spec = pl.BlockSpec((TM, C_pad), lambda i: (i, 0))

    compiler_params = pltpu.CompilerParams(
        dimension_semantics=("parallel",),          # 2 TCs on v7x; harmless elsewhere
        vmem_limit_bytes=32 * 1024 * 1024,          # safe under v7x's 64 MiB VMEM
    )

    if get_feats:
        feats, logits = pl.pallas_call(
            _mlp_kernel_feats,
            grid=grid,
            out_shape=(
                jax.ShapeDtypeStruct((B_pad, H_pad), jnp.float32),
                jax.ShapeDtypeStruct((B_pad, C_pad), jnp.float32),
            ),
            in_specs=[x_spec] + weight_specs,
            out_specs=(feats_spec, logits_spec),
            compiler_params=compiler_params,
        )(x, w1, b1, w2, b2, w3, b3)
        return feats[:B, :H], logits[:B, :C]

    logits = pl.pallas_call(
        _mlp_kernel_logits_only,
        grid=grid,
        out_shape=jax.ShapeDtypeStruct((B_pad, C_pad), jnp.float32),
        in_specs=[x_spec] + weight_specs,
        out_specs=logits_spec,
        compiler_params=compiler_params,
    )(x, w1, b1, w2, b2, w3, b3)
    return logits[:B, :C]


# -----------------------------------------------------------------------------
# Param init + reference
# -----------------------------------------------------------------------------
def init_params(key, input_vector_dim, num_classes, hidden=100):
    """Deterministic synthetic parameter init (shapes match the PyTorch module)."""
    k1, k2, k3, k4, k5, k6 = jax.random.split(key, 6)
    s1 = 1.0 / jnp.sqrt(input_vector_dim)
    s2 = 1.0 / jnp.sqrt(hidden)
    return {
        # vec_emb_proj: Linear(input_vector_dim, 100)  -> stored (in, out)
        "w1": jax.random.uniform(k1, (input_vector_dim, hidden), jnp.float32, -s1, s1),
        "b1": jax.random.uniform(k2, (1, hidden), jnp.float32, -s1, s1),
        # fc1: Linear(100, 100)
        "w2": jax.random.uniform(k3, (hidden, hidden), jnp.float32, -s2, s2),
        "b2": jax.random.uniform(k4, (1, hidden), jnp.float32, -s2, s2),
        # fc2: Linear(100, num_classes)
        "w3": jax.random.uniform(k5, (hidden, num_classes), jnp.float32, -s2, s2),
        "b3": jax.random.uniform(k6, (1, num_classes), jnp.float32, -s2, s2),
    }


def _reference_forward(vector_data, params):
    x = vector_data.astype(jnp.float32)
    h1 = jnp.maximum(x @ params["w1"] + params["b1"], 0.0)
    feats = h1 @ params["w2"] + params["b2"]
    h2 = jnp.maximum(feats, 0.0)
    return feats, h2 @ params["w3"] + params["b3"]


# -----------------------------------------------------------------------------
# Self-test
# -----------------------------------------------------------------------------
if __name__ == "__main__":
    key = jax.random.PRNGKey(0)
    k_data, k_param = jax.random.split(key)

    batch = 8
    input_vector_dim = 32
    num_classes = 4

    vector_data = jax.random.normal(k_data, (batch, input_vector_dim), jnp.float32)
    params = init_params(k_param, input_vector_dim, num_classes)

    # Path 1: get_feats=True (feats + logits).
    feats, logits = clinical_model_forward(vector_data, params, get_feats=True)
    jax.block_until_ready(logits)

    ref_feats, ref_logits = _reference_forward(vector_data, params)
    assert feats.shape == (batch, 100)
    assert logits.shape == (batch, num_classes)
    assert jnp.allclose(feats, ref_feats, atol=1e-4, rtol=1e-4)
    assert jnp.allclose(logits, ref_logits, atol=1e-4, rtol=1e-4)

    # Path 2: get_feats=False (logits-only kernel, no feats HBM writeback).
    logits2 = clinical_model_forward(vector_data, params, get_feats=False)
    jax.block_until_ready(logits2)
    assert logits2.shape == (batch, num_classes)
    assert jnp.allclose(logits2, ref_logits, atol=1e-4, rtol=1e-4)

    # Path 3: bf16 compute path (v6e/v7x friendly) — loose tolerance sanity check.
    logits_bf16 = clinical_model_forward(vector_data, params, get_feats=False,
                                         compute_dtype=jnp.bfloat16)
    jax.block_until_ready(logits_bf16)
    assert jnp.allclose(logits_bf16, ref_logits, atol=5e-2, rtol=5e-2)

    print("KERNEL_OK")
</pallas_src>

<mosaic_0001>
module attributes {stable_mosaic.version = 11 : i64} {
  func.func @_mlp_kernel_feats(%arg0: i32, %arg1: memref<8x32xf32, #tpu.memory_space<vmem>>, %arg2: memref<32x128xf32, #tpu.memory_space<vmem>>, %arg3: memref<1x128xf32, #tpu.memory_space<vmem>>, %arg4: memref<128x128xf32, #tpu.memory_space<vmem>>, %arg5: memref<1x128xf32, #tpu.memory_space<vmem>>, %arg6: memref<128x128xf32, #tpu.memory_space<vmem>>, %arg7: memref<1x128xf32, #tpu.memory_space<vmem>>, %arg8: memref<8x128xf32, #tpu.memory_space<vmem>>, %arg9: memref<8x128xf32, #tpu.memory_space<vmem>>) attributes {dimension_semantics = [#tpu.dimension_semantics<parallel>], iteration_bounds = array<i64: 1>, scalar_prefetch = 0 : i64, scratch_operands = 0 : i64, tpu.core_type = #tpu.core_type<tc>, window_params = [{transform_indices = @transform_0, window_bounds = array<i64: 8, 32>}, {pipeline_mode = #tpu.pipeline_mode<synchronous>, transform_indices = @transform_1, window_bounds = array<i64: 32, 128>}, {pipeline_mode = #tpu.pipeline_mode<synchronous>, transform_indices = @transform_2, window_bounds = array<i64: 1, 128>}, {pipeline_mode = #tpu.pipeline_mode<synchronous>, transform_indices = @transform_3, window_bounds = array<i64: 128, 128>}, {pipeline_mode = #tpu.pipeline_mode<synchronous>, transform_indices = @transform_4, window_bounds = array<i64: 1, 128>}, {pipeline_mode = #tpu.pipeline_mode<synchronous>, transform_indices = @transform_5, window_bounds = array<i64: 128, 128>}, {pipeline_mode = #tpu.pipeline_mode<synchronous>, transform_indices = @transform_6, window_bounds = array<i64: 1, 128>}, {transform_indices = @transform_7, window_bounds = array<i64: 8, 128>}, {transform_indices = @transform_8, window_bounds = array<i64: 8, 128>}]} {
    %c0 = arith.constant 0 : index
    %c0_0 = arith.constant 0 : index
    %0 = vector.load %arg1[%c0, %c0_0] : memref<8x32xf32, #tpu.memory_space<vmem>>, vector<8x32xf32>
    %c0_1 = arith.constant 0 : index
    %c0_2 = arith.constant 0 : index
    %1 = vector.load %arg2[%c0_1, %c0_2] : memref<32x128xf32, #tpu.memory_space<vmem>>, vector<32x128xf32>
    %cst = arith.constant dense<0.000000e+00> : vector<8x128xf32>
    %2 = tpu.matmul %0, %1, %cst {dimension_numbers = #tpu.dot_dimension_numbers<[1], [0], [0], [1], [0, 0, 1, 1], [], []>} : vector<8x32xf32>, vector<32x128xf32>, vector<8x128xf32> -> vector<8x128xf32>
    %c0_3 = arith.constant 0 : index
    %c0_4 = arith.constant 0 : index
    %3 = vector.load %arg3[%c0_3, %c0_4] : memref<1x128xf32, #tpu.memory_space<vmem>>, vector<1x128xf32>
    %4 = vector.broadcast %3 : vector<1x128xf32> to vector<8x128xf32>
    %5 = arith.addf %2, %4 : vector<8x128xf32>
    %cst_5 = arith.constant 0.000000e+00 : f32
    %6 = vector.broadcast %cst_5 : f32 to vector<8x128xf32>
    %7 = arith.maximumf %5, %6 : vector<8x128xf32>
    %c0_6 = arith.constant 0 : index
    %c0_7 = arith.constant 0 : index
    %8 = vector.load %arg4[%c0_6, %c0_7] : memref<128x128xf32, #tpu.memory_space<vmem>>, vector<128x128xf32>
    %cst_8 = arith.constant dense<0.000000e+00> : vector<8x128xf32>
    %9 = tpu.matmul %7, %8, %cst_8 {dimension_numbers = #tpu.dot_dimension_numbers<[1], [0], [0], [1], [0, 0, 1, 1], [], []>} : vector<8x128xf32>, vector<128x128xf32>, vector<8x128xf32> -> vector<8x128xf32>
    %c0_9 = arith.constant 0 : index
    %c0_10 = arith.constant 0 : index
    %10 = vector.load %arg5[%c0_9, %c0_10] : memref<1x128xf32, #tpu.memory_space<vmem>>, vector<1x128xf32>
    %11 = vector.broadcast %10 : vector<1x128xf32> to vector<8x128xf32>
    %12 = arith.addf %9, %11 : vector<8x128xf32>
    %c0_11 = arith.constant 0 : index
    %c0_12 = arith.constant 0 : index
    %13 = vector.load %arg8[%c0_11, %c0_12] : memref<8x128xf32, #tpu.memory_space<vmem>>, vector<8x128xf32>
    tpu.vector_store %arg8[%c0_11, %c0_12], %12 {strides = array<i32>} : memref<8x128xf32, #tpu.memory_space<vmem>>, vector<8x128xf32>,
    %cst_13 = arith.constant 0.000000e+00 : f32
    %14 = vector.broadcast %cst_13 : f32 to vector<8x128xf32>
    %15 = arith.maximumf %12, %14 : vector<8x128xf32>
    %c0_14 = arith.constant 0 : index
    %c0_15 = arith.constant 0 : index
    %16 = vector.load %arg6[%c0_14, %c0_15] : memref<128x128xf32, #tpu.memory_space<vmem>>, vector<128x128xf32>
    %cst_16 = arith.constant dense<0.000000e+00> : vector<8x128xf32>
    %17 = tpu.matmul %15, %16, %cst_16 {dimension_numbers = #tpu.dot_dimension_numbers<[1], [0], [0], [1], [0, 0, 1, 1], [], []>} : vector<8x128xf32>, vector<128x128xf32>, vector<8x128xf32> -> vector<8x128xf32>
    %c0_17 = arith.constant 0 : index
    %c0_18 = arith.constant 0 : index
    %18 = vector.load %arg7[%c0_17, %c0_18] : memref<1x128xf32, #tpu.memory_space<vmem>>, vector<1x128xf32>
    %19 = vector.broadcast %18 : vector<1x128xf32> to vector<8x128xf32>
    %20 = arith.addf %17, %19 : vector<8x128xf32>
    %c0_19 = arith.constant 0 : index
    %c0_20 = arith.constant 0 : index
    %21 = vector.load %arg9[%c0_19, %c0_20] : memref<8x128xf32, #tpu.memory_space<vmem>>, vector<8x128xf32>
    tpu.vector_store %arg9[%c0_19, %c0_20], %20 {strides = array<i32>} : memref<8x128xf32, #tpu.memory_space<vmem>>, vector<8x128xf32>,
    return
  }
  func.func @transform_0(%arg0: i32) -> (i32, i32) {
    %c0_i32 = arith.constant 0 : i32
    %c0_i32_0 = arith.constant 0 : i32
    return %arg0, %c0_i32 : i32, i32
  }
  func.func @transform_1(%arg0: i32) -> (i32, i32) {
    %c0_i32 = arith.constant 0 : i32
    %c0_i32_0 = arith.constant 0 : i32
    %c0_i32_1 = arith.constant 0 : i32
    return %c0_i32, %c0_i32_0 : i32, i32
  }
  func.func @transform_2(%arg0: i32) -> (i32, i32) {
    %c0_i32 = arith.constant 0 : i32
    %c0_i32_0 = arith.constant 0 : i32
    %c0_i32_1 = arith.constant 0 : i32
    return %c0_i32, %c0_i32_0 : i32, i32
  }
  func.func @transform_3(%arg0: i32) -> (i32, i32) {
    %c0_i32 = arith.constant 0 : i32
    %c0_i32_0 = arith.constant 0 : i32
    %c0_i32_1 = arith.constant 0 : i32
    return %c0_i32, %c0_i32_0 : i32, i32
  }
  func.func @transform_4(%arg0: i32) -> (i32, i32) {
    %c0_i32 = arith.constant 0 : i32
    %c0_i32_0 = arith.constant 0 : i32
    %c0_i32_1 = arith.constant 0 : i32
    return %c0_i32, %c0_i32_0 : i32, i32
  }
  func.func @transform_5(%arg0: i32) -> (i32, i32) {
    %c0_i32 = arith.constant 0 : i32
    %c0_i32_0 = arith.constant 0 : i32
    %c0_i32_1 = arith.constant 0 : i32
    return %c0_i32, %c0_i32_0 : i32, i32
  }
  func.func @transform_6(%arg0: i32) -> (i32, i32) {
    %c0_i32 = arith.constant 0 : i32
    %c0_i32_0 = arith.constant 0 : i32
    %c0_i32_1 = arith.constant 0 : i32
    return %c0_i32, %c0_i32_0 : i32, i32
  }
  func.func @transform_7(%arg0: i32) -> (i32, i32) {
    %c0_i32 = arith.constant 0 : i32
    %c0_i32_0 = arith.constant 0 : i32
    return %arg0, %c0_i32 : i32, i32
  }
  func.func @transform_8(%arg0: i32) -> (i32, i32) {
    %c0_i32 = arith.constant 0 : i32
    %c0_i32_0 = arith.constant 0 : i32
    return %arg0, %c0_i32 : i32, i32
  }
}

</mosaic_0001>

<llo_original>
// kernel: tpu_custom_call.1
$region0: #{tpu_custom_call.1}
  #allocation0 [shape = 'u32[]', space=smem, size = 0x4, offset = 0x4, fixed_abs, tag = 'smem constant byte address 0x4 - core index']
  #allocation1 [shape = 'u32[144,128]{1,0:T(1,128)}', space=vmem, size = 0x12000, scoped, tag = 'internal scratch']
  %s0 = inlined_call_operand.hbm [shape: f32[8,32], index: 0, kind: input, shape index: {}]
  %s1 = inlined_call_operand.hbm [shape: f32[32,128], index: 1, kind: input, shape index: {}]
  %s2 = inlined_call_operand.vmem [shape: f32[1,128], index: 2, kind: input, shape index: {}]
  %s3 = inlined_call_operand.hbm [shape: f32[128,128], index: 3, kind: input, shape index: {}]
  %s4 = inlined_call_operand.vmem [shape: f32[1,128], index: 4, kind: input, shape index: {}]
  %s5 = inlined_call_operand.hbm [shape: f32[128,128], index: 5, kind: input, shape index: {}]
  %s6 = inlined_call_operand.vmem [shape: f32[1,128], index: 6, kind: input, shape index: {}]
  %s7 = inlined_call_operand.hbm [shape: f32[8,128], index: 7, kind: output, shape index: {0}]
  %s8 = inlined_call_operand.hbm [shape: f32[8,128], index: 8, kind: output, shape index: {1}]
  %9 = xla_tuple %s7, %s8
  %s10 = sld [smem:[#allocation0]]
  $region62: #{tpu_custom_call.1} parent=0
    _
  %s12 = ssub.s32 1, %s10
  %s13 = scalar_select 0, %s12, %s10
  $region1: #{tpu_custom_call.1} parent=0
    #allocation2 [shape = 'u8[4096]{0}', space=vmem, size = 0x1000, scoped, tag = 'input window, operand 0, single buffered']
    #allocation3 [shape = 's32[1]{0}', space=sflag, size = 0x4, scoped, tag = 'scoped memory for tpu_custom_call.1']
    #allocation4 [shape = 's32[1]{0}', space=sflag, size = 0x4, scoped, tag = 'scoped memory for tpu_custom_call.1']
    #allocation5 [shape = 'u8[16384]{0}', space=vmem, size = 0x4000, scoped, tag = 'input window, operand 1, single buffered']
    #allocation6 [shape = 's32[1]{0}', space=sflag, size = 0x4, scoped, tag = 'scoped memory for tpu_custom_call.1']
    #allocation7 [shape = 'u8[65536]{0}', space=vmem, size = 0x10000, scoped, tag = 'input window, operand 3, single buffered']
    #allocation8 [shape = 'u8[65536]{0}', space=vmem, size = 0x10000, scoped, tag = 'input window, operand 5, single buffered']
    #allocation9 [shape = 's32[1]{0}', space=sflag, size = 0x4, scoped, tag = 'scoped memory for tpu_custom_call.1']
    #allocation10 [shape = 'u8[4096]{0}', space=vmem, size = 0x1000, scoped, tag = 'output window, operand 0, single buffered']
    #allocation11 [shape = 'u8[4096]{0}', space=vmem, size = 0x1000, scoped, tag = 'output window, operand 1, single buffered']
    #allocation12 [shape = 's32[1]{0}', space=sflag, size = 0x4, scoped, tag = 'scoped memory for tpu_custom_call.1']
    %14 = vsyncpa [#allocation3], 0
    %15 = vsyncpa [#allocation6], 0
    %16 = vsyncpa [#allocation9], 0
    %17 = vsyncpa [#allocation4], 0
    %18 = vsyncpa [#allocation12], 0
    // Predicated region
    $region2: #{tpu_custom_call.1} parent=1 // pred_check
      _
    $region3: #{tpu_custom_call.1} parent=1 // pred_check_branch
      %20 = sbr.rel (0) target = $region5
    $region4: #{tpu_custom_call.1} parent=1 // pred_region
      %s22 = ssub.s32 128, 128
      %23 = vsyncadd [#allocation3], %s22
      %s25 = sshll.u32 [#allocation2], 4
      %s26 = int_to_ptr.vmem [resolvable:$true] %s25
      %28 = dma.hbm_to_vmem [thread:$0]  %s0, 128, %s26, [#allocation3]
    $region5: #{tpu_custom_call.1} parent=1 // pred_fallthru
      _
    // Predicated region
    $region6: #{tpu_custom_call.1} parent=1 // pred_check
      _
    $region7: #{tpu_custom_call.1} parent=1 // pred_check_branch
      %30 = sbr.rel (0) target = $region9
    $region8: #{tpu_custom_call.1} parent=1 // pred_region
      %s32 = ssub.s32 512, 512
      %33 = vsyncadd [#allocation6], %s32
      %s34 = sshll.u32 [#allocation5], 4
      %s35 = int_to_ptr.vmem [resolvable:$true] %s34
      %40 = dma.hbm_to_vmem [thread:$0]  %s1, 512, %s35, [#allocation6], 128, 128, 8
    $region9: #{tpu_custom_call.1} parent=1 // pred_fallthru
      _
    // Predicated region
    $region10: #{tpu_custom_call.1} parent=1 // pred_check
      _
    $region11: #{tpu_custom_call.1} parent=1 // pred_check_branch
      %42 = sbr.rel (0) target = $region13
    $region12: #{tpu_custom_call.1} parent=1 // pred_region
      _
    $region13: #{tpu_custom_call.1} parent=1 // pred_fallthru
      _
    // Predicated region
    $region14: #{tpu_custom_call.1} parent=1 // pred_check
      _
    $region15: #{tpu_custom_call.1} parent=1 // pred_check_branch
      %44 = sbr.rel (0) target = $region17
    $region16: #{tpu_custom_call.1} parent=1 // pred_region
      %s46 = ssub.s32 2048, 2048
      %47 = vsyncadd [#allocation6], %s46
      %s48 = sshll.u32 [#allocation7], 4
      %s49 = int_to_ptr.vmem [resolvable:$true] %s48
      %54 = dma.hbm_to_vmem [thread:$0]  %s3, 2048, %s49, [#allocation6], 128, 128, 8
    $region17: #{tpu_custom_call.1} parent=1 // pred_fallthru
      _
    // Predicated region
    $region18: #{tpu_custom_call.1} parent=1 // pred_check
      _
    $region19: #{tpu_custom_call.1} parent=1 // pred_check_branch
      %56 = sbr.rel (0) target = $region21
    $region20: #{tpu_custom_call.1} parent=1 // pred_region
      _
    $region21: #{tpu_custom_call.1} parent=1 // pred_fallthru
      _
    // Predicated region
    $region22: #{tpu_custom_call.1} parent=1 // pred_check
      _
    $region23: #{tpu_custom_call.1} parent=1 // pred_check_branch
      %58 = sbr.rel (0) target = $region25
    $region24: #{tpu_custom_call.1} parent=1 // pred_region
      %s60 = ssub.s32 2048, 2048
      %61 = vsyncadd [#allocation9], %s60
      %s62 = sshll.u32 [#allocation8], 4
      %s63 = int_to_ptr.vmem [resolvable:$true] %s62
      %68 = dma.hbm_to_vmem [thread:$0]  %s5, 2048, %s63, [#allocation9], 128, 128, 8
    $region25: #{tpu_custom_call.1} parent=1 // pred_fallthru
      _
    // Predicated region
    $region26: #{tpu_custom_call.1} parent=1 // pred_check
      _
    $region27: #{tpu_custom_call.1} parent=1 // pred_check_branch
      %70 = sbr.rel (0) target = $region29
    $region28: #{tpu_custom_call.1} parent=1 // pred_region
      _
    $region29: #{tpu_custom_call.1} parent=1 // pred_fallthru
      _
    // Predicated region
    $region30: #{tpu_custom_call.1} parent=1 // pred_check
      _
    $region31: #{tpu_custom_call.1} parent=1 // pred_check_branch
      %72 = sbr.rel (0) target = $region33
    $region32: #{tpu_custom_call.1} parent=1 // pred_region
      %73 = dma.done [#allocation3], 128
    $region33: #{tpu_custom_call.1} parent=1 // pred_fallthru
      _
    // Predicated region
    $region34: #{tpu_custom_call.1} parent=1 // pred_check
      _
    $region35: #{tpu_custom_call.1} parent=1 // pred_check_branch
      %75 = sbr.rel (0) target = $region37
    $region36: #{tpu_custom_call.1} parent=1 // pred_region
      %76 = dma.done [#allocation6], 512
    $region37: #{tpu_custom_call.1} parent=1 // pred_fallthru
      _
    // Predicated region
    $region38: #{tpu_custom_call.1} parent=1 // pred_check
      _
    $region39: #{tpu_custom_call.1} parent=1 // pred_check_branch
      %78 = sbr.rel (0) target = $region41
    $region40: #{tpu_custom_call.1} parent=1 // pred_region
      %79 = dma.done [#allocation6], 2048
    $region41: #{tpu_custom_call.1} parent=1 // pred_fallthru
      _
    // Predicated region
    $region42: #{tpu_custom_call.1} parent=1 // pred_check
      _
    $region43: #{tpu_custom_call.1} parent=1 // pred_check_branch
      %81 = sbr.rel (0) target = $region45
    $region44: #{tpu_custom_call.1} parent=1 // pred_region
      %82 = dma.done [#allocation9], 2048
    $region45: #{tpu_custom_call.1} parent=1 // pred_fallthru
      _
    %v83 = vld [vmem:[#allocation2] sm:$0xff]
    %v84 = vld [vmem:[#allocation5] sm:$0xff]
    %v85 = vld [vmem:[#allocation5 + $0x8] sm:$0xff]
    %v86 = vld [vmem:[#allocation5 + $0x10] sm:$0xff]
    %v87 = vld [vmem:[#allocation5 + $0x18] sm:$0xff]
    %v88 = vld [vmem:[%s2] sm:$0x1]
    %v90 = vlaneseq
    %v91 = vshrl.u32 %v90, 7
    %v92 = vsub.s32 0, %v91
    %v93 = vrot.slane %v88, %v92
    %vm95 = vcmask 261120
    %v97 = vsel %vm95, %v83, 0
    %99 = vmatprep.subr.mxu0 0.0
    %100 = vmatpush1.msra.mxu0 %v84
    %101 = vmatprep.subr.mxu0 0.0
    %102 = vmatpush1.msra.mxu0 %v85
    %103 = vmatprep.subr.mxu0 0.0
    %104 = vmatpush1.msra.mxu0 %v86
    %105 = vmatprep.subr.mxu0 0.0
    %106 = vmatpush1.msra.mxu0 %v87
    %107 = vmatprep.subr.mxu0 0.0
    %108 = vmatpush1.msra.mxu0 0.0
    %109 = vmatprep.subr.mxu0 0.0
    %110 = vmatpush1.msra.mxu0 0.0
    %111 = vmatprep.subr.mxu0 0.0
    %112 = vmatpush1.msra.mxu0 0.0
    %113 = vmatprep.subr.mxu0 0.0
    %114 = vmatpush1.msra.mxu0 0.0
    %115 = vmatprep.subr.mxu0 0.0
    %116 = vmatpush1.msra.mxu0 0.0
    %117 = vmatprep.subr.mxu0 0.0
    %118 = vmatpush1.msra.mxu0 0.0
    %119 = vmatprep.subr.mxu0 0.0
    %120 = vmatpush1.msra.mxu0 0.0
    %121 = vmatprep.subr.mxu0 0.0
    %122 = vmatpush1.msra.mxu0 0.0
    %123 = vmatprep.subr.mxu0 0.0
    %124 = vmatpush1.msra.mxu0 0.0
    %125 = vmatprep.subr.mxu0 0.0
    %126 = vmatpush1.msra.mxu0 0.0
    %127 = vmatprep.subr.mxu0 0.0
    %128 = vmatpush1.msra.mxu0 0.0
    %129 = vmatprep.subr.mxu0 0.0
    %130 = vmatpush1.msra.mxu0 0.0
    %131 = vmatprep.subr.mxu0 0.0
    %132 = vmatpush1.msra.mxu0 0.0
    %133 = vmatprep.subr.mxu0 0.0
    %134 = vmatpush1.msra.mxu0 0.0
    %135 = vmatprep.subr.mxu0 0.0
    %136 = vmatpush1.msra.mxu0 0.0
    %137 = vmatprep.subr.mxu0 0.0
    %138 = vmatpush1.msra.mxu0 0.0
    %139 = vmatprep.subr.mxu0 0.0
    %140 = vmatpush1.msra.mxu0 0.0
    %141 = vmatprep.subr.mxu0 0.0
    %142 = vmatpush1.msra.mxu0 0.0
    %143 = vmatprep.subr.mxu0 0.0
    %144 = vmatpush1.msra.mxu0 0.0
    %145 = vmatprep.subr.mxu0 0.0
    %146 = vmatpush1.msra.mxu0 0.0
    %147 = vmatprep.subr.mxu0 0.0
    %148 = vmatpush1.msra.mxu0 0.0
    %149 = vmatprep.subr.mxu0 0.0
    %150 = vmatpush1.msra.mxu0 0.0
    %151 = vmatprep.subr.mxu0 0.0
    %152 = vmatpush1.msra.mxu0 0.0
    %153 = vmatprep.subr.mxu0 0.0
    %154 = vmatpush1.msra.mxu0 0.0
    %155 = vmatprep.subr.mxu0 0.0
    %156 = vmatpush1.msra.mxu0 0.0
    %157 = vmatprep.subr.mxu0 0.0
    %158 = vmatpush1.msra.mxu0 0.0
    %159 = vmatprep.subr.mxu0 0.0
    %160 = vmatpush1.msra.mxu0 0.0
    %161 = vmatprep.subr.mxu0 0.0
    %162 = vmatpush1.msra.mxu0 0.0
    %163 = vmatprep.mubr.f32.mxu0 0.0
    %164 = vmatmul.mubr.f32.gmra.mrb[0].mxu0 %v97
    %v165 = vpop.f32.mrb[0].mxu0
    %v166 = vadd.f32 %v93, %v165
    %v167 = vpop.f32.mrb[0].mxu0
    %168 = vdwg.mxu0
    %v169 = vmax.f32 %v166, 0.0
    %v170 = vld [vmem:[#allocation7] sm:$0xff]
    %v171 = vld [vmem:[#allocation7 + $0x8] sm:$0xff]
    %v172 = vld [vmem:[#allocation7 + $0x10] sm:$0xff]
    %v173 = vld [vmem:[#allocation7 + $0x18] sm:$0xff]
    %v174 = vld [vmem:[#allocation7 + $0x20] sm:$0xff]
    %v175 = vld [vmem:[#allocation7 + $0x28] sm:$0xff]
    %v176 = vld [vmem:[#allocation7 + $0x30] sm:$0xff]
    %v177 = vld [vmem:[#allocation7 + $0x38] sm:$0xff]
    %v178 = vld [vmem:[#allocation7 + $0x40] sm:$0xff]
    %v179 = vld [vmem:[#allocation7 + $0x48] sm:$0xff]
    %v180 = vld [vmem:[#allocation7 + $0x50] sm:$0xff]
    %v181 = vld [vmem:[#allocation7 + $0x58] sm:$0xff]
    %v182 = vld [vmem:[#allocation7 + $0x60] sm:$0xff]
    %v183 = vld [vmem:[#allocation7 + $0x68] sm:$0xff]
    %v184 = vld [vmem:[#allocation7 + $0x70] sm:$0xff]
    %v185 = vld [vmem:[#allocation7 + $0x78] sm:$0xff]
    %v186 = vld [vmem:[%s4] sm:$0x1]
    %v188 = vlaneseq
    %v189 = vshrl.u32 %v188, 7
    %v190 = vsub.s32 0, %v189
    %v191 = vrot.slane %v186, %v190
    %193 = vmatprep.subr.mxu0 0.0
    %194 = vmatpush1.msra.mxu0 %v170
    %195 = vmatprep.subr.mxu0 0.0
    %196 = vmatpush1.msra.mxu0 %v171
    %197 = vmatprep.subr.mxu0 0.0
    %198 = vmatpush1.msra.mxu0 %v172
    %199 = vmatprep.subr.mxu0 0.0
    %200 = vmatpush1.msra.mxu0 %v173
    %201 = vmatprep.subr.mxu0 0.0
    %202 = vmatpush1.msra.mxu0 %v174
    %203 = vmatprep.subr.mxu0 0.0
    %204 = vmatpush1.msra.mxu0 %v175
    %205 = vmatprep.subr.mxu0 0.0
    %206 = vmatpush1.msra.mxu0 %v176
    %207 = vmatprep.subr.mxu0 0.0
    %208 = vmatpush1.msra.mxu0 %v177
    %209 = vmatprep.subr.mxu0 0.0
    %210 = vmatpush1.msra.mxu0 %v178
    %211 = vmatprep.subr.mxu0 0.0
    %212 = vmatpush1.msra.mxu0 %v179
    %213 = vmatprep.subr.mxu0 0.0
    %214 = vmatpush1.msra.mxu0 %v180
    %215 = vmatprep.subr.mxu0 0.0
    %216 = vmatpush1.msra.mxu0 %v181
    %217 = vmatprep.subr.mxu0 0.0
    %218 = vmatpush1.msra.mxu0 %v182
    %219 = vmatprep.subr.mxu0 0.0
    %220 = vmatpush1.msra.mxu0 %v183
    %221 = vmatprep.subr.mxu0 0.0
    %222 = vmatpush1.msra.mxu0 %v184
    %223 = vmatprep.subr.mxu0 0.0
    %224 = vmatpush1.msra.mxu0 %v185
    %225 = vmatprep.subr.mxu0 0.0
    %226 = vmatpush1.msra.mxu0 0.0
    %227 = vmatprep.subr.mxu0 0.0
    %228 = vmatpush1.msra.mxu0 0.0
    %229 = vmatprep.subr.mxu0 0.0
    %230 = vmatpush1.msra.mxu0 0.0
    %231 = vmatprep.subr.mxu0 0.0
    %232 = vmatpush1.msra.mxu0 0.0
    %233 = vmatprep.subr.mxu0 0.0
    %234 = vmatpush1.msra.mxu0 0.0
    %235 = vmatprep.subr.mxu0 0.0
    %236 = vmatpush1.msra.mxu0 0.0
    %237 = vmatprep.subr.mxu0 0.0
    %238 = vmatpush1.msra.mxu0 0.0
    %239 = vmatprep.subr.mxu0 0.0
    %240 = vmatpush1.msra.mxu0 0.0
    %241 = vmatprep.subr.mxu0 0.0
    %242 = vmatpush1.msra.mxu0 0.0
    %243 = vmatprep.subr.mxu0 0.0
    %244 = vmatpush1.msra.mxu0 0.0
    %245 = vmatprep.subr.mxu0 0.0
    %246 = vmatpush1.msra.mxu0 0.0
    %247 = vmatprep.subr.mxu0 0.0
    %248 = vmatpush1.msra.mxu0 0.0
    %249 = vmatprep.subr.mxu0 0.0
    %250 = vmatpush1.msra.mxu0 0.0
    %251 = vmatprep.subr.mxu0 0.0
    %252 = vmatpush1.msra.mxu0 0.0
    %253 = vmatprep.subr.mxu0 0.0
    %254 = vmatpush1.msra.mxu0 0.0
    %255 = vmatprep.subr.mxu0 0.0
    %256 = vmatpush1.msra.mxu0 0.0
    %257 = vmatprep.mubr.f32.mxu0 0.0
    %258 = vmatmul.mubr.f32.gmra.mrb[0].mxu0 %v169
    %v259 = vpop.f32.mrb[0].mxu0
    %v260 = vadd.f32 %v191, %v259
    %v261 = vpop.f32.mrb[0].mxu0
    %262 = vdwg.mxu0
    %263 = vst [vmem:[#allocation10] sm:$0xff] %v260
    %v264 = vmax.f32 %v260, 0.0
    %v265 = vld [vmem:[#allocation8] sm:$0xff]
    %v266 = vld [vmem:[#allocation8 + $0x8] sm:$0xff]
    %v267 = vld [vmem:[#allocation8 + $0x10] sm:$0xff]
    %v268 = vld [vmem:[#allocation8 + $0x18] sm:$0xff]
    %v269 = vld [vmem:[#allocation8 + $0x20] sm:$0xff]
    %v270 = vld [vmem:[#allocation8 + $0x28] sm:$0xff]
    %v271 = vld [vmem:[#allocation8 + $0x30] sm:$0xff]
    %v272 = vld [vmem:[#allocation8 + $0x38] sm:$0xff]
    %v273 = vld [vmem:[#allocation8 + $0x40] sm:$0xff]
    %v274 = vld [vmem:[#allocation8 + $0x48] sm:$0xff]
    %v275 = vld [vmem:[#allocation8 + $0x50] sm:$0xff]
    %v276 = vld [vmem:[#allocation8 + $0x58] sm:$0xff]
    %v277 = vld [vmem:[#allocation8 + $0x60] sm:$0xff]
    %v278 = vld [vmem:[#allocation8 + $0x68] sm:$0xff]
    %v279 = vld [vmem:[#allocation8 + $0x70] sm:$0xff]
    %v280 = vld [vmem:[#allocation8 + $0x78] sm:$0xff]
    %v281 = vld [vmem:[%s6] sm:$0x1]
    %v283 = vlaneseq
    %v284 = vshrl.u32 %v283, 7
    %v285 = vsub.s32 0, %v284
    %v286 = vrot.slane %v281, %v285
    %288 = vmatprep.subr.mxu0 0.0
    %289 = vmatpush1.msra.mxu0 %v265
    %290 = vmatprep.subr.mxu0 0.0
    %291 = vmatpush1.msra.mxu0 %v266
    %292 = vmatprep.subr.mxu0 0.0
    %293 = vmatpush1.msra.mxu0 %v267
    %294 = vmatprep.subr.mxu0 0.0
    %295 = vmatpush1.msra.mxu0 %v268
    %296 = vmatprep.subr.mxu0 0.0
    %297 = vmatpush1.msra.mxu0 %v269
    %298 = vmatprep.subr.mxu0 0.0
    %299 = vmatpush1.msra.mxu0 %v270
    %300 = vmatprep.subr.mxu0 0.0
    %301 = vmatpush1.msra.mxu0 %v271
    %302 = vmatprep.subr.mxu0 0.0
    %303 = vmatpush1.msra.mxu0 %v272
    %304 = vmatprep.subr.mxu0 0.0
    %305 = vmatpush1.msra.mxu0 %v273
    %306 = vmatprep.subr.mxu0 0.0
    %307 = vmatpush1.msra.mxu0 %v274
    %308 = vmatprep.subr.mxu0 0.0
    %309 = vmatpush1.msra.mxu0 %v275
    %310 = vmatprep.subr.mxu0 0.0
    %311 = vmatpush1.msra.mxu0 %v276
    %312 = vmatprep.subr.mxu0 0.0
    %313 = vmatpush1.msra.mxu0 %v277
    %314 = vmatprep.subr.mxu0 0.0
    %315 = vmatpush1.msra.mxu0 %v278
    %316 = vmatprep.subr.mxu0 0.0
    %317 = vmatpush1.msra.mxu0 %v279
    %318 = vmatprep.subr.mxu0 0.0
    %319 = vmatpush1.msra.mxu0 %v280
    %320 = vmatprep.subr.mxu0 0.0
    %321 = vmatpush1.msra.mxu0 0.0
    %322 = vmatprep.subr.mxu0 0.0
    %323 = vmatpush1.msra.mxu0 0.0
    %324 = vmatprep.subr.mxu0 0.0
    %325 = vmatpush1.msra.mxu0 0.0
    %326 = vmatprep.subr.mxu0 0.0
    %327 = vmatpush1.msra.mxu0 0.0
    %328 = vmatprep.subr.mxu0 0.0
    %329 = vmatpush1.msra.mxu0 0.0
    %330 = vmatprep.subr.mxu0 0.0
    %331 = vmatpush1.msra.mxu0 0.0
    %332 = vmatprep.subr.mxu0 0.0
    %333 = vmatpush1.msra.mxu0 0.0
    %334 = vmatprep.subr.mxu0 0.0
    %335 = vmatpush1.msra.mxu0 0.0
    %336 = vmatprep.subr.mxu0 0.0
    %337 = vmatpush1.msra.mxu0 0.0
    %338 = vmatprep.subr.mxu0 0.0
    %339 = vmatpush1.msra.mxu0 0.0
    %340 = vmatprep.subr.mxu0 0.0
    %341 = vmatpush1.msra.mxu0 0.0
    %342 = vmatprep.subr.mxu0 0.0
    %343 = vmatpush1.msra.mxu0 0.0
    %344 = vmatprep.subr.mxu0 0.0
    %345 = vmatpush1.msra.mxu0 0.0
    %346 = vmatprep.subr.mxu0 0.0
    %347 = vmatpush1.msra.mxu0 0.0
    %348 = vmatprep.subr.mxu0 0.0
    %349 = vmatpush1.msra.mxu0 0.0
    %350 = vmatprep.subr.mxu0 0.0
    %351 = vmatpush1.msra.mxu0 0.0
    %352 = vmatprep.mubr.f32.mxu0 0.0
    %353 = vmatmul.mubr.f32.gmra.mrb[0].mxu0 %v264
    %v354 = vpop.f32.mrb[0].mxu0
    %v355 = vadd.f32 %v286, %v354
    %v356 = vpop.f32.mrb[0].mxu0
    %357 = vdwg.mxu0
    %358 = vst [vmem:[#allocation11] sm:$0xff] %v355
    // Predicated region
    $region46: #{tpu_custom_call.1} parent=1 // pred_check
      _
    $region47: #{tpu_custom_call.1} parent=1 // pred_check_branch
      %360 = sbr.rel (0) target = $region49
    $region48: #{tpu_custom_call.1} parent=1 // pred_region
      %s362 = ssub.s32 128, 128
      %363 = vsyncadd [#allocation4], %s362
      %s365 = sshll.u32 [#allocation10], 4
      %s366 = int_to_ptr.vmem [resolvable:$true] %s365
      %368 = dma.vmem_to_hbm [thread:$0]  %s366, 128, %s7, [#allocation4]
    $region49: #{tpu_custom_call.1} parent=1 // pred_fallthru
      _
    // Predicated region
    $region50: #{tpu_custom_call.1} parent=1 // pred_check
      _
    $region51: #{tpu_custom_call.1} parent=1 // pred_check_branch
      %370 = sbr.rel (0) target = $region53
    $region52: #{tpu_custom_call.1} parent=1 // pred_region
      %s372 = ssub.s32 128, 128
      %373 = vsyncadd [#allocation12], %s372
      %s375 = sshll.u32 [#allocation11], 4
      %s376 = int_to_ptr.vmem [resolvable:$true] %s375
      %378 = dma.vmem_to_hbm [thread:$0]  %s376, 128, %s8, [#allocation12]
    $region53: #{tpu_custom_call.1} parent=1 // pred_fallthru
      _
    // Predicated region
    $region54: #{tpu_custom_call.1} parent=1 // pred_check
      _
    $region55: #{tpu_custom_call.1} parent=1 // pred_check_branch
      %380 = sbr.rel (0) target = $region57
    $region56: #{tpu_custom_call.1} parent=1 // pred_region
      %381 = dma.done [#allocation4], 128
    $region57: #{tpu_custom_call.1} parent=1 // pred_fallthru
      _
    // Predicated region
    $region58: #{tpu_custom_call.1} parent=1 // pred_check
      _
    $region59: #{tpu_custom_call.1} parent=1 // pred_check_branch
      %383 = sbr.rel (0) target = $region61
    $region60: #{tpu_custom_call.1} parent=1 // pred_region
      %384 = dma.done [#allocation12], 128
    $region61: #{tpu_custom_call.1} parent=1 // pred_fallthru
      _
    %385 = vsyncpa [#allocation3], 1
    %386 = vsyncpa [#allocation6], 1
    %387 = vsyncpa [#allocation9], 1
    %388 = vsyncpa [#allocation4], 1
    %389 = vsyncpa [#allocation12], 1

</llo_original>
